<compile_context>
chip_gen: v6e
topology: v6e:2x2x1
jax: 0.10.0
libtpu: 0.0.40
codegen_flags: <defaults>
</compile_context>

<pallas_src>
import jax
import jax.numpy as jnp
from jax.experimental import pallas as pl
from jax.experimental.pallas import tpu as pltpu


def _round_up(x: int, m: int) -> int:
    return ((x + m - 1) // m) * m


def _output_proj_kernel(x_ref, w_ref, o_ref):
    # x_ref: (1, tm, D) block of the (B, T_pad, D) input (native dtype)
    # w_ref: (D, N) full weight, resident across the grid
    # o_ref: (1, N, tm) block of the (B, N, T_pad) output
    x = x_ref[0]          # (tm, D), native dtype -> MXU fast path for bf16
    w = w_ref[...]        # (D, N),  native dtype
    y = jnp.dot(x, w, preferred_element_type=jnp.float32)   # (tm, N) f32 acc
    p = 1.0 / (1.0 + jnp.exp(-y))                            # sigmoid (EUP exp)
    o_ref[0] = p.T.astype(o_ref.dtype)                       # (N, tm), lane-dense store


def output_projections(x, w, *, tm_max: int = 256):
    """x: (B, T, D), w: (D, N)  ->  (B, N, T) = sigmoid(x @ w).transpose(-2, -1)."""
    B, T, D = x.shape
    Dw, N = w.shape
    assert Dw == D, (Dw, D)

    # Row-tile selection: single full-T block when T is small, else a 256-row
    # tile (multiple of 128 -> lane-dense transposed output blocks).
    if T <= tm_max:
        tm = _round_up(T, 8)
    else:
        tm = tm_max
    T_pad = _round_up(T, tm)
    if T_pad != T:
        x = jnp.pad(x, ((0, 0), (0, T_pad - T), (0, 0)))

    grid = (B, T_pad // tm)

    itemsize_x = jnp.dtype(x.dtype).itemsize
    itemsize_w = jnp.dtype(w.dtype).itemsize
    # Double-buffered x/out tiles + (double-buffered) resident weight, plus headroom.
    vmem_bytes = (2 * tm * D * itemsize_x
                  + 2 * N * tm * itemsize_x
                  + 2 * D * N * itemsize_w)
    vmem_limit = min(max(2 * vmem_bytes + (4 << 20), 32 << 20), 64 << 20)

    cost = pl.CostEstimate(
        flops=2 * B * T_pad * D * N,
        transcendentals=B * T_pad * N,
        bytes_accessed=(B * T_pad * D * itemsize_x
                        + D * N * itemsize_w
                        + B * N * T_pad * itemsize_x),
    )

    out = pl.pallas_call(
        _output_proj_kernel,
        out_shape=jax.ShapeDtypeStruct((B, N, T_pad), x.dtype),
        grid_spec=pltpu.PrefetchScalarGridSpec(
            num_scalar_prefetch=0,
            grid=grid,
            in_specs=[
                pl.BlockSpec((1, tm, D), lambda b, t: (b, t, 0)),   # x rows
                pl.BlockSpec((D, N), lambda b, t: (0, 0)),          # weight (constant index)
            ],
            out_specs=pl.BlockSpec((1, N, tm), lambda b, t: (b, 0, t)),
        ),
        compiler_params=pltpu.CompilerParams(
            dimension_semantics=("parallel", "parallel"),
            vmem_limit_bytes=vmem_limit,
        ),
        cost_estimate=cost,
    )(x, w)

    if T_pad != T:
        out = out[:, :, :T]
    return out


def _reference(x, w):
    y = jnp.dot(x.astype(jnp.float32), w.astype(jnp.float32))   # (B, T, N)
    p = jax.nn.sigmoid(y)
    return jnp.swapaxes(p, -2, -1)                               # (B, N, T)


if __name__ == "__main__":
    key = jax.random.PRNGKey(0)

    def run_case(B, T, D, N):
        kx, kw = jax.random.split(jax.random.fold_in(key, B * 100000 + T * 1000 + D + N))
        x = jax.random.normal(kx, (B, T, D), dtype=jnp.float32)
        # Equivalent of torch nn.Linear(D, N, bias=False).weight.T, stored (D, N).
        w = jax.random.normal(kw, (D, N), dtype=jnp.float32) * 0.05

        out = output_projections(x, w)
        out = jax.block_until_ready(out)

        ref = _reference(x, w)
        assert out.shape == (B, N, T), (out.shape, (B, N, T))
        err = float(jnp.max(jnp.abs(out.astype(jnp.float32) - ref)))
        assert jnp.allclose(out.astype(jnp.float32), ref, atol=5e-4, rtol=5e-4), err

    # Small shape consistent with the module's (B, T, D) forward.
    run_case(B=2, T=8, D=32, N=16)
    # Exercise the padded / multi-block T path (tm=256, T=300 padded to 512).
    run_case(B=2, T=300, D=128, N=8)

    print("KERNEL_OK")
</pallas_src>

<mosaic_0001>
module attributes {stable_mosaic.version = 11 : i64} {
  func.func @_output_proj_kernel(%arg0: i32, %arg1: i32, %arg2: memref<1x8x32xf32, #tpu.memory_space<vmem>>, %arg3: memref<32x16xf32, #tpu.memory_space<vmem>>, %arg4: memref<1x16x8xf32, #tpu.memory_space<vmem>>) attributes {dimension_semantics = [#tpu.dimension_semantics<parallel>, #tpu.dimension_semantics<parallel>], iteration_bounds = array<i64: 2, 1>, scalar_prefetch = 0 : i64, scratch_operands = 0 : i64, tpu.core_type = #tpu.core_type<tc>, window_params = [{transform_indices = @transform_0, window_bounds = array<i64: 1, 8, 32>}, {pipeline_mode = #tpu.pipeline_mode<synchronous>, transform_indices = @transform_1, window_bounds = array<i64: 32, 16>}, {transform_indices = @transform_2, window_bounds = array<i64: 1, 16, 8>}]} {
    %c0 = arith.constant 0 : index
    %c0_0 = arith.constant 0 : index
    %c0_1 = arith.constant 0 : index
    %0 = vector.load %arg2[%c0, %c0_0, %c0_1] : memref<1x8x32xf32, #tpu.memory_space<vmem>>, vector<1x8x32xf32>
    %1 = vector.shape_cast %0 : vector<1x8x32xf32> to vector<8x32xf32>
    %c0_2 = arith.constant 0 : index
    %c0_3 = arith.constant 0 : index
    %2 = vector.load %arg3[%c0_2, %c0_3] : memref<32x16xf32, #tpu.memory_space<vmem>>, vector<32x16xf32>
    %cst = arith.constant dense<0.000000e+00> : vector<8x16xf32>
    %3 = tpu.matmul %1, %2, %cst {dimension_numbers = #tpu.dot_dimension_numbers<[1], [0], [0], [1], [0, 0, 1, 1], [], []>} : vector<8x32xf32>, vector<32x16xf32>, vector<8x16xf32> -> vector<8x16xf32>
    %cst_4 = arith.constant 0.000000e+00 : f32
    %4 = vector.broadcast %cst_4 : f32 to vector<8x16xf32>
    %5 = arith.subf %4, %3 : vector<8x16xf32>
    %6 = math.exp %5 : vector<8x16xf32>
    %cst_5 = arith.constant 1.000000e+00 : f32
    %7 = vector.broadcast %cst_5 : f32 to vector<8x16xf32>
    %8 = arith.addf %7, %6 : vector<8x16xf32>
    %cst_6 = arith.constant 1.000000e+00 : f32
    %9 = vector.broadcast %cst_6 : f32 to vector<8x16xf32>
    %10 = arith.divf %9, %8 : vector<8x16xf32>
    %11 = tpu.transpose %10, [1, 0] : vector<8x16xf32> -> vector<16x8xf32>
    %c0_7 = arith.constant 0 : index
    %c0_8 = arith.constant 0 : index
    %c0_9 = arith.constant 0 : index
    %12 = vector.load %arg4[%c0_7, %c0_8, %c0_9] : memref<1x16x8xf32, #tpu.memory_space<vmem>>, vector<1x16x8xf32>
    %13 = vector.shape_cast %12 : vector<1x16x8xf32> to vector<16x8xf32>
    %14 = vector.shape_cast %11 : vector<16x8xf32> to vector<1x16x8xf32>
    tpu.vector_store %arg4[%c0_7, %c0_8, %c0_9], %14 {strides = array<i32>} : memref<1x16x8xf32, #tpu.memory_space<vmem>>, vector<1x16x8xf32>,
    return
  }
  func.func @transform_0(%arg0: i32, %arg1: i32) -> (i32, i32, i32) {
    %c0_i32 = arith.constant 0 : i32
    %c0_i32_0 = arith.constant 0 : i32
    return %arg0, %arg1, %c0_i32 : i32, i32, i32
  }
  func.func @transform_1(%arg0: i32, %arg1: i32) -> (i32, i32) {
    %c0_i32 = arith.constant 0 : i32
    %c0_i32_0 = arith.constant 0 : i32
    %c0_i32_1 = arith.constant 0 : i32
    return %c0_i32, %c0_i32_0 : i32, i32
  }
  func.func @transform_2(%arg0: i32, %arg1: i32) -> (i32, i32, i32) {
    %c0_i32 = arith.constant 0 : i32
    %c0_i32_0 = arith.constant 0 : i32
    return %arg0, %c0_i32, %arg1 : i32, i32, i32
  }
}

</mosaic_0001>

<llo_original>
// kernel: tpu_custom_call.1
$region0: #{tpu_custom_call.1}
  #allocation0 [shape = 'u32[]', space=smem, size = 0x4, offset = 0x4, fixed_abs, tag = 'smem constant byte address 0x4 - core index']
  #allocation1 [shape = 'u32[144,128]{1,0:T(1,128)}', space=vmem, size = 0x12000, scoped, tag = 'internal scratch']
  %s0 = inlined_call_operand.vmem [shape: f32[2,8,32], index: 0, kind: input, shape index: {}]
  %s1 = inlined_call_operand.vmem [shape: f32[32,16], index: 1, kind: input, shape index: {}]
  %s2 = inlined_call_operand.vmem [shape: f32[2,16,8], index: 2, kind: output, shape index: {}]
  %s3 = sld [smem:[#allocation0]]
  $region41: #{tpu_custom_call.1} parent=0
    _
  %s5 = ssub.s32 1, %s3
  %s6 = scalar_select 0, %s5, %s3
  loop: start=0, step=1, limit=4
  $region2: #{tpu_custom_call.1} parent=0 // loop_pre_header
    _
  $region3: #{tpu_custom_call.1} parent=0 // loop_header
    %s8 = sphi 0, %s12
    %p9 = scmp.ge.s32.totalorder %s8, 4
    %s15 = sphi 0, %s27
    %s16 = sphi 0, %s23
    %s17 = sphi 0, %s15
    %s18 = sphi 0, %s16
    %s19 = sphi 0, %s17
    %s20 = sphi 0, %s18
    %s32 = sphi 0, %s34
    %s35 = sphi 0, %s32
    %s36 = sphi 0, %s35
    %s52 = sphi 0, %s36
    %s56 = sphi 0, %s56
    %s58 = sphi 0, %s56
    %s59 = sphi 0, %s58
    %s73 = sphi 0, %s59
    %s81 = sphi 0, %s83
    %s84 = sphi 0, %s81
    %s85 = sphi 0, %s84
    %s101 = sphi 0, %s85
  $region4: #{tpu_custom_call.1} parent=0 // loop_header_branch
    %11 = sbr.rel (%p9) target = $region8
  $region5: #{tpu_custom_call.1} parent=0 // loop_body
    %s13 = ssub.s32 %s8, 1
    %s14 = ssub.s32 %s8, 2
    %s21 = sadd.s32 1, %s16
    %p22 = scmp.ge.s32.totalorder %s21, 1
    %s23 = scalar_select %p22, 0, %s21
    %s24 = sadd.s32 1, %s15
    %s25 = scalar_select %p22, %s24, %s15
    %p26 = scmp.ge.s32.totalorder %s25, 2
    %s27 = scalar_select %p26, 0, %s25
    %s28 = ssub.s32 %s15, %s27
    %s29 = ssub.s32 %s16, %s23
    %s30 = sor.u32 %s28, %s29
    %p31 = scmp.eq.s32.totalorder %s30, 0
    %s33 = sadd.s32 %s32, 1
    %s34 = scalar_select %p31, %s32, %s33
    %p37 = pneg %p31
    %p38 = scmp.eq.s32.totalorder %s8, 1
    %p39 = por %p37, %p38
    %p40 = scmp.ne.s32.totalorder %s32, %s35
    %p41 = scmp.eq.s32.totalorder %s8, 0
    %p42 = por %p40, %p41
    %p43 = scmp.ne.s32.totalorder %s32, %s35
    %p44 = scmp.eq.s32.totalorder %s13, 1
    %p45 = por %p43, %p44
    %p46 = scmp.ne.s32.totalorder %s35, %s36
    %p47 = scmp.eq.s32.totalorder %s13, 0
    %p48 = por %p46, %p47
    %p49 = scmp.ne.s32.totalorder %s35, %s36
    %p50 = scmp.eq.s32.totalorder %s14, 1
    %p51 = por %p49, %p50
    %p53 = scmp.ne.s32.totalorder %s36, %s52
    %p54 = scmp.eq.s32.totalorder %s14, 0
    %p55 = por %p53, %p54
    %s57 = sadd.s32 %s56, 1
    %p60 = scmp.eq.s32.totalorder %s8, 1
    %p61 = scmp.ne.s32.totalorder %s56, %s58
    %p62 = scmp.eq.s32.totalorder %s8, 0
    %p63 = por %p61, %p62
    %p64 = scmp.ne.s32.totalorder %s56, %s58
    %p65 = scmp.eq.s32.totalorder %s13, 1
    %p66 = por %p64, %p65
    %p67 = scmp.ne.s32.totalorder %s58, %s59
    %p68 = scmp.eq.s32.totalorder %s13, 0
    %p69 = por %p67, %p68
    %p70 = scmp.ne.s32.totalorder %s58, %s59
    %p71 = scmp.eq.s32.totalorder %s14, 1
    %p72 = por %p70, %p71
    %p74 = scmp.ne.s32.totalorder %s59, %s73
    %p75 = scmp.eq.s32.totalorder %s14, 0
    %p76 = por %p74, %p75
    %s77 = ssub.s32 %s15, %s27
    %s78 = ssub.s32 %s16, %s23
    %s79 = sor.u32 %s77, %s78
    %p80 = scmp.eq.s32.totalorder %s79, 0
    %s82 = sadd.s32 %s81, 1
    %s83 = scalar_select %p80, %s81, %s82
    %p86 = pneg %p80
    %p87 = scmp.eq.s32.totalorder %s8, 1
    %p88 = por %p86, %p87
    %p89 = scmp.ne.s32.totalorder %s81, %s84
    %p90 = scmp.eq.s32.totalorder %s8, 0
    %p91 = por %p89, %p90
    %p92 = scmp.ne.s32.totalorder %s81, %s84
    %p93 = scmp.eq.s32.totalorder %s13, 1
    %p94 = por %p92, %p93
    %p95 = scmp.ne.s32.totalorder %s84, %s85
    %p96 = scmp.eq.s32.totalorder %s13, 0
    %p97 = por %p95, %p96
    %p98 = scmp.ne.s32.totalorder %s84, %s85
    %p99 = scmp.eq.s32.totalorder %s14, 1
    %p100 = por %p98, %p99
    %p102 = scmp.ne.s32.totalorder %s85, %s101
    %p103 = scmp.eq.s32.totalorder %s14, 0
    %p104 = por %p102, %p103
    %p105 = scmp.le.s32.totalorder 1, %s8
    %p106 = scmp.lt.s32.totalorder %s8, 3
    %p107 = pnand %p105, %p106
    %p108 = pneg %p107
    // Predicated region
    $region9: #{tpu_custom_call.1} parent=5 // pred_check
      _
    $region10: #{tpu_custom_call.1} parent=5 // pred_check_branch
      %110 = sbr.rel (%p107) target = $region12
    $region11: #{tpu_custom_call.1} parent=5 // pred_region
      %s111 = ssub.s32 %s8, 1
      // Predicated region
      $region13: #{tpu_custom_call.1} parent=11 // pred_check
        %p112 = pneg %p69
      $region14: #{tpu_custom_call.1} parent=11 // pred_check_branch
        %114 = sbr.rel (%p112) target = $region16
      $region15: #{tpu_custom_call.1} parent=11 // pred_region
        _
      $region16: #{tpu_custom_call.1} parent=11 // pred_fallthru
        _
    $region12: #{tpu_custom_call.1} parent=5 // pred_fallthru
      _
    %p115 = scmp.lt.s32.totalorder %s8, 2
    // Predicated region
    $region17: #{tpu_custom_call.1} parent=5 // pred_check
      %p116 = pneg %p115
    $region18: #{tpu_custom_call.1} parent=5 // pred_check_branch
      %118 = sbr.rel (%p116) target = $region20
    $region19: #{tpu_custom_call.1} parent=5 // pred_region
      // Predicated region
      $region21: #{tpu_custom_call.1} parent=19 // pred_check
        %p119 = pneg %p42
      $region22: #{tpu_custom_call.1} parent=19 // pred_check_branch
        %121 = sbr.rel (%p119) target = $region24
      $region23: #{tpu_custom_call.1} parent=19 // pred_region
        %p122 = scmp.lt.s32.totalorder %s15, 1
        %s123 = scalar_select %p122, %s15, 1
        %p124 = scmp.lt.s32.totalorder %s16, 0
        %s125 = scalar_select %p124, %s16, 0
        %s126 = sadd.s32 %s125, %s123
        %s127 = smul.addr %s126, 8
        %s128 = scalar_lea.vmem %s0, %s127
      $region24: #{tpu_custom_call.1} parent=19 // pred_fallthru
        _
    $region20: #{tpu_custom_call.1} parent=5 // pred_fallthru
      _
    %p129 = scmp.le.s32.totalorder 1, %s8
    %p130 = scmp.lt.s32.totalorder %s8, 3
    %p131 = pnand %p129, %p130
    %p132 = pneg %p131
    // Predicated region
    $region25: #{tpu_custom_call.1} parent=5 // pred_check
      _
    $region26: #{tpu_custom_call.1} parent=5 // pred_check_branch
      %134 = sbr.rel (%p131) target = $region28
    $region27: #{tpu_custom_call.1} parent=5 // pred_region
      %s135 = ssub.s32 %s8, 1
      %p136 = scmp.lt.s32.totalorder %s17, 1
      %s137 = scalar_select %p136, %s17, 1
      %p138 = scmp.lt.s32.totalorder %s18, 0
      %s139 = scalar_select %p138, %s18, 0
      %s140 = sadd.s32 %s139, %s137
      %s141 = smul.addr %s140, 8
      %s142 = scalar_lea.vmem %s0, %s141
      %p143 = pneg %p48
      %p144 = pneg %p45
      %p145 = pneg %p69
      %p146 = pneg %p66
      %p147 = pneg %p97
      %p148 = pneg %p94
      %p149 = scmp.lt.s32.totalorder %s17, 1
      %s150 = scalar_select %p149, %s17, 1
      %p151 = scmp.lt.s32.totalorder %s18, 0
      %s152 = scalar_select %p151, %s18, 0
      %s153 = smul.addr %s150, 2
      %s154 = sadd.s32 %s152, %s153
      %s155 = smul.addr %s154, 8
      %s156 = scalar_lea.vmem %s2, %s155
      %p157 = scmp.lt.s32.totalorder %s17, 1
      %s158 = scalar_select %p157, %s17, 1
      %p159 = scmp.lt.s32.totalorder %s18, 0
      %s160 = scalar_select %p159, %s18, 0
      %s161 = sadd.s32 %s160, %s158
      %s162 = smul.addr %s161, 8
      %s163 = scalar_lea.vmem %s0, %s162
      %p164 = scmp.lt.s32.totalorder %s17, 1
      %s165 = scalar_select %p164, %s17, 1
      %p166 = scmp.lt.s32.totalorder %s18, 0
      %s167 = scalar_select %p166, %s18, 0
      %s168 = smul.addr %s165, 2
      %s169 = sadd.s32 %s167, %s168
      %s170 = smul.addr %s169, 8
      %s171 = scalar_lea.vmem %s2, %s170
      %v172 = vld [vmem:[%s163] sm:$0xff]
      %v173 = vld [vmem:[%s1] sm:$0xff]
      %v174 = vld [vmem:[%s1 + $0x8] sm:$0xff]
      %v175 = vld [vmem:[%s1 + $0x10] sm:$0xff]
      %v176 = vld [vmem:[%s1 + $0x18] sm:$0xff]
      %vm177 = vcmask 261120
      %v179 = vsel %vm177, %v172, 0
      %181 = vmatprep.subr.mxu0 0.0
      %182 = vmatpush1.msra.mxu0 0.0
      %183 = vmatprep.subr.mxu0 0.0
      %184 = vmatpush1.msra.mxu0 0.0
      %185 = vmatprep.subr.mxu0 0.0
      %186 = vmatpush1.msra.mxu0 0.0
      %187 = vmatprep.subr.mxu0 0.0
      %188 = vmatpush1.msra.mxu0 0.0
      %189 = vmatprep.subr.mxu0 0.0
      %190 = vmatpush1.msra.mxu0 0.0
      %191 = vmatprep.subr.mxu0 0.0
      %192 = vmatpush1.msra.mxu0 0.0
      %193 = vmatprep.subr.mxu0 0.0
      %194 = vmatpush1.msra.mxu0 0.0
      %195 = vmatprep.subr.mxu0 0.0
      %196 = vmatpush1.msra.mxu0 0.0
      %197 = vmatprep.subr.mxu0 0.0
      %198 = vmatpush1.msra.mxu0 0.0
      %199 = vmatprep.subr.mxu0 0.0
      %200 = vmatpush1.msra.mxu0 0.0
      %201 = vmatprep.subr.mxu0 0.0
      %202 = vmatpush1.msra.mxu0 0.0
      %203 = vmatprep.subr.mxu0 0.0
      %204 = vmatpush1.msra.mxu0 0.0
      %205 = vmatprep.subr.mxu0 0.0
      %206 = vmatpush1.msra.mxu0 %v176
      %207 = vmatprep.subr.mxu0 0.0
      %208 = vmatpush1.msra.mxu0 %v175
      %209 = vmatprep.subr.mxu0 0.0
      %210 = vmatpush1.msra.mxu0 %v174
      %211 = vmatprep.subr.mxu0 0.0
      %212 = vmatpush1.msra.mxu0 %v173
      %213 = vmatprep.subr.mxu0 0.0
      %214 = vmatpush2.msra.mxu0 0.0
      %215 = vmatprep.subr.mxu0 0.0
      %216 = vmatpush2.msra.mxu0 0.0
      %217 = vmatprep.subr.mxu0 0.0
      %218 = vmatpush2.msra.mxu0 0.0
      %219 = vmatprep.subr.mxu0 0.0
      %220 = vmatpush2.msra.mxu0 0.0
      %221 = vmatprep.subr.mxu0 0.0
      %222 = vmatpush2.msra.mxu0 0.0
      %223 = vmatprep.subr.mxu0 0.0
      %224 = vmatpush2.msra.mxu0 0.0
      %225 = vmatprep.subr.mxu0 0.0
      %226 = vmatpush2.msra.mxu0 0.0
      %227 = vmatprep.subr.mxu0 0.0
      %228 = vmatpush2.msra.mxu0 0.0
      %229 = vmatprep.subr.mxu0 0.0
      %230 = vmatpush2.msra.mxu0 0.0
      %231 = vmatprep.subr.mxu0 0.0
      %232 = vmatpush2.msra.mxu0 0.0
      %233 = vmatprep.subr.mxu0 0.0
      %234 = vmatpush2.msra.mxu0 0.0
      %235 = vmatprep.subr.mxu0 0.0
      %236 = vmatpush2.msra.mxu0 0.0
      %237 = vmatprep.subr.mxu0 0.0
      %238 = vmatpush2.msra.mxu0 0.0
      %239 = vmatprep.subr.mxu0 0.0
      %240 = vmatpush2.msra.mxu0 0.0
      %241 = vmatprep.subr.mxu0 0.0
      %242 = vmatpush2.msra.mxu0 0.0
      %243 = vmatprep.subr.mxu0 0.0
      %244 = vmatpush2.msra.mxu0 0.0
      %245 = vmatprep.mubr.f32.mxu0 0.0
      %246 = vmatmul.mubr.f32.gmra.mxu0 %v179
      %v247 = vpop.f32.mrf.mxu0
      %v248 = vadd.f32 0.0, %v247
      %v249 = vpop.f32.mrf.mxu0
      %250 = vdwg.mxu0
      %v251 = vsub.f32 0.0, %v248
      %v252 = vmul.f32 %v251, 1.442695
      %v253 = vpow.pop %v252
      %v254 = vadd.f32 %v253, 1.0
      %v255 = vrcp.pop %v254
      %v256 = vmul.f32 1.0, %v255
      %257 = vxpose.xlu0.b32.start [1/16] %v256, 128
      %258 = vxpose.xlu0.b32.cont [2/16] 0.0, 128
      %259 = vxpose.xlu0.b32.cont [3/16] 0.0, 128
      %260 = vxpose.xlu0.b32.cont [4/16] 0.0, 128
      %261 = vxpose.xlu0.b32.cont [5/16] 0.0, 128
      %262 = vxpose.xlu0.b32.cont [6/16] 0.0, 128
      %263 = vxpose.xlu0.b32.cont [7/16] 0.0, 128
      %264 = vxpose.xlu0.b32.cont [8/16] 0.0, 128
      %265 = vxpose.xlu0.b32.cont [9/16] 0.0, 128
      %266 = vxpose.xlu0.b32.cont [10/16] 0.0, 128
      %267 = vxpose.xlu0.b32.cont [11/16] 0.0, 128
      %268 = vxpose.xlu0.b32.cont [12/16] 0.0, 128
      %269 = vxpose.xlu0.b32.cont [13/16] 0.0, 128
      %270 = vxpose.xlu0.b32.cont [14/16] 0.0, 128
      %271 = vxpose.xlu0.b32.cont [15/16] 0.0, 128
      %272 = vxpose.xlu0.b32.end [16/16] 0.0, 128
      %v273 = vpop.trf.xlu0
      %v274 = vpop.trf.xlu0
      %v275 = vpop.trf.xlu0
      %v276 = vpop.trf.xlu0
      %v277 = vpop.trf.xlu0
      %v278 = vpop.trf.xlu0
      %v279 = vpop.trf.xlu0
      %v280 = vpop.trf.xlu0
      %v281 = vpop.trf.xlu0
      %v282 = vpop.trf.xlu0
      %v283 = vpop.trf.xlu0
      %v284 = vpop.trf.xlu0
      %v285 = vpop.trf.xlu0
      %v286 = vpop.trf.xlu0
      %v287 = vpop.trf.xlu0
      %v288 = vpop.trf.xlu0
      %vm289 = vcmask 64512
      %290 = vst.msk [vmem:[%s171] sm:$0xff] %vm289, %v273
      %291 = vst.msk [vmem:[%s171 + $0x8] sm:$0xff] %vm289, %v274
      %p292 = scmp.lt.s32.totalorder %s17, 1
      %s293 = scalar_select %p292, %s17, 1
      %p294 = scmp.lt.s32.totalorder %s18, 0
      %s295 = scalar_select %p294, %s18, 0
      %s296 = smul.addr %s293, 2
      %s297 = sadd.s32 %s295, %s296
      %s298 = smul.addr %s297, 8
      %s299 = scalar_lea.vmem %s2, %s298
      // Predicated region
      $region29: #{tpu_custom_call.1} parent=27 // pred_check
        %p300 = pneg %p94
      $region30: #{tpu_custom_call.1} parent=27 // pred_check_branch
        %302 = sbr.rel (%p300) target = $region32
      $region31: #{tpu_custom_call.1} parent=27 // pred_region
        _
      $region32: #{tpu_custom_call.1} parent=27 // pred_fallthru
        _
    $region28: #{tpu_custom_call.1} parent=5 // pred_fallthru
      _
    %p303 = scmp.le.s32.totalorder 2, %s8
    // Predicated region
    $region33: #{tpu_custom_call.1} parent=5 // pred_check
      %p304 = pneg %p303
    $region34: #{tpu_custom_call.1} parent=5 // pred_check_branch
      %306 = sbr.rel (%p304) target = $region36
    $region35: #{tpu_custom_call.1} parent=5 // pred_region
      %s307 = ssub.s32 %s8, 2
      // Predicated region
      $region37: #{tpu_custom_call.1} parent=35 // pred_check
        %p308 = pneg %p100
      $region38: #{tpu_custom_call.1} parent=35 // pred_check_branch
        %310 = sbr.rel (%p308) target = $region40
      $region39: #{tpu_custom_call.1} parent=35 // pred_region
        %p311 = scmp.lt.s32.totalorder %s19, 1
        %s312 = scalar_select %p311, %s19, 1
        %p313 = scmp.lt.s32.totalorder %s20, 0
        %s314 = scalar_select %p313, %s20, 0
        %s315 = smul.addr %s312, 2
        %s316 = sadd.s32 %s314, %s315
        %s317 = smul.addr %s316, 8
        %s318 = scalar_lea.vmem %s2, %s317
      $region40: #{tpu_custom_call.1} parent=35 // pred_fallthru
        _
    $region36: #{tpu_custom_call.1} parent=5 // pred_fallthru
      _
  $region6: #{tpu_custom_call.1} parent=0 // loop_footer
    %s12 = sadd.s32 1, %s8
  $region7: #{tpu_custom_call.1} parent=0 // loop_footer_branch
    %7 = sbr.rel target = $region3
  $region8: #{tpu_custom_call.1} parent=0 // loop_exit
    _

</llo_original>
